<compile_context>
chip_gen: v5e
topology: v5e:2x2
jax: 0.10.0
libtpu: 0.0.40
codegen_flags: <defaults>
</compile_context>

<pallas_src>
import jax
import jax.numpy as jnp
from jax.experimental import pallas as pl
from jax.experimental.pallas import tpu as pltpu


def _lane_tile_cap():
    """Per-generation cap on the lane tile (elements along L)."""
    try:
        kind = jax.devices()[0].device_kind.lower()
    except Exception:
        kind = ""
    if "v7" in kind:
        return 16384   # 8 MiB / buffer, 16 MiB double-buffered (< 32 MiB scoped)
    if "v6" in kind:
        return 8192    # 4 MiB / buffer
    return 4096        # v5e and older / unknown: 2 MiB / buffer


def _vmem_limit(x_tile_bytes, out_tile_bytes):
    need = 2 * x_tile_bytes + 2 * out_tile_bytes + (4 << 20)
    return int(min(max(need, 16 << 20), 48 << 20))


# ---------------------------------------------------------------------------
# Kernels
# ---------------------------------------------------------------------------
def _fused_mlp_lane_kernel(x_ref, w_ref, b_ref, o_ref):
    # x_ref: (128, tL)  channels on sublanes, L tokens on lanes (native NCL tile)
    # w_ref: (1, 128)   fused W1@W2@W3 as a lane-dense row (constant VMEM block)
    # b_ref: (1,)       fused bias in SMEM
    # o_ref: (1, tL)    lane-dense output tile
    y = jnp.dot(w_ref[...], x_ref[...], preferred_element_type=jnp.float32)
    o_ref[...] = jnp.maximum(y + b_ref[0], 0.0).astype(o_ref.dtype)


def _fused_mlp_batch_kernel(x_ref, w_ref, b_ref, o_ref):
    # x_ref: (bB, 128, L) contiguous NCL slab; w_ref: (1, 128); b_ref: (1,) SMEM
    # o_ref: (bB, 1, L)
    x = x_ref[...]
    w = w_ref[...]                                            # (1, 128)
    y = jnp.sum(x * w[:, :, None], axis=1, keepdims=True)     # (bB, 1, L) f32
    o_ref[...] = jnp.maximum(y + b_ref[0], 0.0).astype(o_ref.dtype)


# ---------------------------------------------------------------------------
# pallas_call wrappers
# ---------------------------------------------------------------------------
def _mlp_pallas_lane(x_ncl, w_row, b_vec, *, tile_l):
    B, C, L = x_ncl.shape
    grid = (B, pl.cdiv(L, tile_l))
    vmem = _vmem_limit(C * tile_l * 4, tile_l * 4)
    return pl.pallas_call(
        _fused_mlp_lane_kernel,
        out_shape=jax.ShapeDtypeStruct((B, 1, L), jnp.float32),
        grid_spec=pltpu.PrefetchScalarGridSpec(
            num_scalar_prefetch=0,
            grid=grid,
            in_specs=[
                # batch squeezed, full C on sublanes, tile_l lanes (partial edge OK)
                pl.BlockSpec((None, C, tile_l), lambda b, l: (b, 0, l)),
                pl.BlockSpec((1, C), lambda b, l: (0, 0)),               # weight row
                pl.BlockSpec(memory_space=pltpu.MemorySpace.SMEM),       # bias
            ],
            out_specs=pl.BlockSpec((None, 1, tile_l), lambda b, l: (b, 0, l)),
        ),
        compiler_params=pltpu.CompilerParams(
            dimension_semantics=("parallel", "parallel"),
            vmem_limit_bytes=vmem,
        ),
    )(x_ncl, w_row, b_vec)


def _mlp_pallas_batch(x_ncl, w_row, b_vec, *, tile_b):
    B, C, L = x_ncl.shape
    grid = (pl.cdiv(B, tile_b),)
    vmem = _vmem_limit(tile_b * C * L * 4, tile_b * L * 4)
    return pl.pallas_call(
        _fused_mlp_batch_kernel,
        out_shape=jax.ShapeDtypeStruct((B, 1, L), jnp.float32),
        grid_spec=pltpu.PrefetchScalarGridSpec(
            num_scalar_prefetch=0,
            grid=grid,
            in_specs=[
                pl.BlockSpec((tile_b, C, L), lambda i: (i, 0, 0)),       # contiguous slab
                pl.BlockSpec((1, C), lambda i: (0, 0)),                  # weight row
                pl.BlockSpec(memory_space=pltpu.MemorySpace.SMEM),       # bias
            ],
            out_specs=pl.BlockSpec((tile_b, 1, L), lambda i: (i, 0, 0)),
        ),
        compiler_params=pltpu.CompilerParams(
            dimension_semantics=("parallel",),
            vmem_limit_bytes=vmem,
        ),
    )(x_ncl, w_row, b_vec)


# ---------------------------------------------------------------------------
# Forward
# ---------------------------------------------------------------------------
def mlp_forward(x_ncl, params):
    """x_ncl: (B, 128, L) float32 — same layout as the PyTorch forward input.
    Returns (B, 1, L) float32."""
    w1, b1, w2, b2, w3, b3 = params
    B, C, L = x_ncl.shape
    assert C == 128

    # Algebraic fusion of the three bias-affine layers (no intermediate ReLU).
    w_fused = (w1 @ w2) @ w3                   # (128, 1)
    b_fused = (b1 @ w2 + b2) @ w3 + b3         # (1,)
    w_row = w_fused.reshape(1, C)              # lane-dense (1, 128) row
    b_vec = b_fused.reshape(1)

    cap = _lane_tile_cap()
    if L >= cap:
        # Long-L regime: tile over lanes; partial edge block instead of jnp.pad.
        return _mlp_pallas_lane(x_ncl, w_row, b_vec, tile_l=cap)

    # Small-L regime: block over batch so each grid step moves a single
    # contiguous (tile_b, 128, L) slab of ~cap*128*4 bytes.
    per_batch_bytes = C * L * 4
    target_bytes = cap * C * 4
    tile_b = max(1, target_bytes // per_batch_bytes)
    tile_b = min(tile_b, B)
    if B >= 2:
        tile_b = min(tile_b, pl.cdiv(B, 2))    # keep >=2 grid steps for megacore
    return _mlp_pallas_batch(x_ncl, w_row, b_vec, tile_b=tile_b)


# ---------------------------------------------------------------------------
# Params / reference
# ---------------------------------------------------------------------------
def init_params(key):
    # Deterministic init mimicking nn.Linear's uniform(-1/sqrt(fan_in), ...).
    ks = jax.random.split(key, 6)

    def lin(kw, kb, fan_in, fan_out):
        bound = 1.0 / jnp.sqrt(fan_in)
        # Stored as (fan_in, fan_out) so x @ W matches PyTorch's x @ weight.T.
        w = jax.random.uniform(kw, (fan_in, fan_out), jnp.float32, -bound, bound)
        b = jax.random.uniform(kb, (fan_out,), jnp.float32, -bound, bound)
        return w, b

    w1, b1 = lin(ks[0], ks[1], 128, 64)
    w2, b2 = lin(ks[2], ks[3], 64, 32)
    w3, b3 = lin(ks[4], ks[5], 32, 1)
    return (w1, b1, w2, b2, w3, b3)


def reference_forward(x_ncl, params):
    # Unfused, layer-by-layer reference (matches the PyTorch module exactly).
    w1, b1, w2, b2, w3, b3 = params
    x = jnp.transpose(x_ncl, (0, 2, 1))
    x = x @ w1 + b1
    x = x @ w2 + b2
    x = x @ w3 + b3
    x = jnp.maximum(x, 0.0)
    return jnp.transpose(x, (0, 2, 1))


if __name__ == "__main__":
    key = jax.random.PRNGKey(0)
    kp, kx1, kx2 = jax.random.split(key, 3)
    params = init_params(kp)

    # Small-L / batch-blocked path (module's expected input layout).
    B, C, L = 2, 128, 8
    x_small = jax.random.normal(kx1, (B, C, L), jnp.float32)
    out_small = jax.block_until_ready(mlp_forward(x_small, params))
    ref_small = reference_forward(x_small, params)
    assert out_small.shape == (B, 1, L), out_small.shape
    err_s = jnp.max(jnp.abs(out_small - ref_small))
    assert jnp.allclose(out_small, ref_small, atol=1e-4, rtol=1e-4), f"max abs err {err_s}"

    # Long-L / lane-tiled path with a partial edge tile (no jnp.pad copy).
    L2 = _lane_tile_cap() + 123
    x_long = jax.random.normal(kx2, (1, 128, L2), jnp.float32)
    out_long = jax.block_until_ready(mlp_forward(x_long, params))
    ref_long = reference_forward(x_long, params)
    assert out_long.shape == (1, 1, L2), out_long.shape
    err_l = jnp.max(jnp.abs(out_long - ref_long))
    assert jnp.allclose(out_long, ref_long, atol=1e-4, rtol=1e-4), f"max abs err {err_l}"

    print("KERNEL_OK")
</pallas_src>

<mosaic_0001>
module attributes {stable_mosaic.version = 11 : i64} {
  func.func @_fused_mlp_batch_kernel(%arg0: i32, %arg1: memref<1x128x8xf32, #tpu.memory_space<vmem>>, %arg2: memref<1x128xf32, #tpu.memory_space<vmem>>, %arg3: memref<1xf32, #tpu.memory_space<smem>>, %arg4: memref<1x1x8xf32, #tpu.memory_space<vmem>>) attributes {dimension_semantics = [#tpu.dimension_semantics<parallel>], iteration_bounds = array<i64: 2>, scalar_prefetch = 0 : i64, scratch_operands = 0 : i64, tpu.core_type = #tpu.core_type<tc>, window_params = [{transform_indices = @transform_0, window_bounds = array<i64: 1, 128, 8>}, {pipeline_mode = #tpu.pipeline_mode<synchronous>, transform_indices = @transform_1, window_bounds = array<i64: 1, 128>}, {transform_indices = @transform_2, window_bounds = array<i64: 1>}, {transform_indices = @transform_3, window_bounds = array<i64: 1, 1, 8>}]} {
    %c0 = arith.constant 0 : index
    %c0_0 = arith.constant 0 : index
    %c0_1 = arith.constant 0 : index
    %0 = vector.load %arg1[%c0, %c0_0, %c0_1] : memref<1x128x8xf32, #tpu.memory_space<vmem>>, vector<1x128x8xf32>
    %c0_2 = arith.constant 0 : index
    %c0_3 = arith.constant 0 : index
    %1 = vector.load %arg2[%c0_2, %c0_3] : memref<1x128xf32, #tpu.memory_space<vmem>>, vector<1x128xf32>
    %2 = vector.shape_cast %1 : vector<1x128xf32> to vector<1x128x1xf32>
    %3 = vector.broadcast %2 : vector<1x128x1xf32> to vector<1x128x8xf32>
    %4 = arith.mulf %0, %3 : vector<1x128x8xf32>
    %cst = arith.constant dense<0.000000e+00> : vector<1x8xf32>
    %5 = vector.multi_reduction <add>, %4, %cst [1] : vector<1x128x8xf32> to vector<1x8xf32>
    %6 = vector.shape_cast %5 : vector<1x8xf32> to vector<1x1x8xf32>
    %c0_4 = arith.constant 0 : index
    %7 = memref.load %arg3[%c0_4] : memref<1xf32, #tpu.memory_space<smem>>
    %8 = vector.broadcast %7 : f32 to vector<1x1x8xf32>
    %9 = arith.addf %6, %8 : vector<1x1x8xf32>
    %cst_5 = arith.constant 0.000000e+00 : f32
    %10 = vector.broadcast %cst_5 : f32 to vector<1x1x8xf32>
    %11 = arith.maximumf %9, %10 : vector<1x1x8xf32>
    %c0_6 = arith.constant 0 : index
    %c0_7 = arith.constant 0 : index
    %c0_8 = arith.constant 0 : index
    %12 = vector.load %arg4[%c0_6, %c0_7, %c0_8] : memref<1x1x8xf32, #tpu.memory_space<vmem>>, vector<1x1x8xf32>
    tpu.vector_store %arg4[%c0_6, %c0_7, %c0_8], %11 {strides = array<i32>} : memref<1x1x8xf32, #tpu.memory_space<vmem>>, vector<1x1x8xf32>,
    return
  }
  func.func @transform_0(%arg0: i32) -> (i32, i32, i32) {
    %c0_i32 = arith.constant 0 : i32
    %c0_i32_0 = arith.constant 0 : i32
    %c0_i32_1 = arith.constant 0 : i32
    return %arg0, %c0_i32, %c0_i32_0 : i32, i32, i32
  }
  func.func @transform_1(%arg0: i32) -> (i32, i32) {
    %c0_i32 = arith.constant 0 : i32
    %c0_i32_0 = arith.constant 0 : i32
    %c0_i32_1 = arith.constant 0 : i32
    return %c0_i32, %c0_i32_0 : i32, i32
  }
  func.func @transform_2(%arg0: i32) -> i32 {
    %c0_i32 = arith.constant 0 : i32
    %c0_i32_0 = arith.constant 0 : i32
    return %c0_i32 : i32
  }
  func.func @transform_3(%arg0: i32) -> (i32, i32, i32) {
    %c0_i32 = arith.constant 0 : i32
    %c0_i32_0 = arith.constant 0 : i32
    %c0_i32_1 = arith.constant 0 : i32
    return %arg0, %c0_i32, %c0_i32_0 : i32, i32, i32
  }
}

</mosaic_0001>

<llo_original>
// kernel: tpu_custom_call.1
$region0: #{tpu_custom_call.1}
  #allocation0 [shape = 'u32[]', space=smem, size = 0x4, offset = 0x4, fixed_abs, tag = 'smem constant byte address 0x4 - core index']
  #allocation1 [shape = 'u32[72,128]{1,0:T(1,128)}', space=vmem, size = 0x9000, scoped, tag = 'internal scratch']
  #allocation2 [shape = 'f32[1]{0:T(128)S(6)}', space=smem, size = 0x200, scoped, tag = 'scoped memory for tpu_custom_call.1']
  %s0 = inlined_call_operand.vmem [shape: f32[2,128,8], index: 0, kind: input, shape index: {}]
  %s1 = inlined_call_operand.vmem [shape: f32[1,128], index: 1, kind: input, shape index: {}]
  %s2 = inlined_call_operand.<no memory space> [shape: f32[1], index: 2, kind: input, shape index: {}]
  %s3 = inlined_call_operand.hbm [shape: f32[2,1,8], index: 3, kind: output, shape index: {}]
  %s4 = sld [smem:[#allocation0]]
  $region45: #{tpu_custom_call.1} parent=0
    _
  %s6 = ssub.s32 1, %s4
  %s7 = scalar_select 0, %s6, %s4
  %8 = sst [smem:[#allocation2]] %s2
  $region1: #{tpu_custom_call.1} parent=0
    #allocation3 [shape = 'u8[1024]{0}', space=vmem, size = 0x400, scoped, tag = 'output window, operand 0']
    #allocation4 [shape = 's32[2]{0}', space=sflag, size = 0x8, scoped, tag = 'scoped memory for tpu_custom_call.1']
    %9 = vsyncpa [#allocation4], 0
    %s10 = scalar_lea.sflag [#allocation4], 1
    %11 = vsyncpa %s10, 0
    loop: start=0, step=1, limit=4
    $region2: #{tpu_custom_call.1} parent=1 // loop_pre_header
      _
    $region3: #{tpu_custom_call.1} parent=1 // loop_header
      %s13 = sphi 0, %s17
      %p14 = scmp.ge.s32.totalorder %s13, 4
      %s23 = sphi 0, %s25
      %s26 = sphi 0, %s23
      %s27 = sphi 0, %s26
      %s43 = sphi 0, %s27
      %s47 = sphi 0, %s47
      %s49 = sphi 0, %s47
      %s50 = sphi 0, %s49
      %s64 = sphi 0, %s50
      %s68 = sphi 0, %s68
      %s70 = sphi 0, %s68
      %s71 = sphi 0, %s70
      %s85 = sphi 0, %s71
      %s91 = sphi 0, %s93
      %s94 = sphi 0, %s91
      %s95 = sphi 0, %s94
      %s111 = sphi 0, %s95
    $region4: #{tpu_custom_call.1} parent=1 // loop_header_branch
      %16 = sbr.rel (%p14) target = $region8
    $region5: #{tpu_custom_call.1} parent=1 // loop_body
      %s18 = ssub.s32 %s13, 1
      %s19 = ssub.s32 %s13, 2
      %s20 = sadd.s32 %s13, 1
      %s21 = ssub.s32 %s13, %s20
      %p22 = scmp.eq.s32.totalorder %s21, 0
      %s24 = sadd.s32 %s23, 1
      %s25 = scalar_select %p22, %s23, %s24
      %p28 = pneg %p22
      %p29 = scmp.eq.s32.totalorder %s13, 1
      %p30 = por %p28, %p29
      %p31 = scmp.ne.s32.totalorder %s23, %s26
      %p32 = scmp.eq.s32.totalorder %s13, 0
      %p33 = por %p31, %p32
      %p34 = scmp.ne.s32.totalorder %s23, %s26
      %p35 = scmp.eq.s32.totalorder %s18, 1
      %p36 = por %p34, %p35
      %p37 = scmp.ne.s32.totalorder %s26, %s27
      %p38 = scmp.eq.s32.totalorder %s18, 0
      %p39 = por %p37, %p38
      %p40 = scmp.ne.s32.totalorder %s26, %s27
      %p41 = scmp.eq.s32.totalorder %s19, 1
      %p42 = por %p40, %p41
      %p44 = scmp.ne.s32.totalorder %s27, %s43
      %p45 = scmp.eq.s32.totalorder %s19, 0
      %p46 = por %p44, %p45
      %s48 = sadd.s32 %s47, 1
      %p51 = scmp.eq.s32.totalorder %s13, 1
      %p52 = scmp.ne.s32.totalorder %s47, %s49
      %p53 = scmp.eq.s32.totalorder %s13, 0
      %p54 = por %p52, %p53
      %p55 = scmp.ne.s32.totalorder %s47, %s49
      %p56 = scmp.eq.s32.totalorder %s18, 1
      %p57 = por %p55, %p56
      %p58 = scmp.ne.s32.totalorder %s49, %s50
      %p59 = scmp.eq.s32.totalorder %s18, 0
      %p60 = por %p58, %p59
      %p61 = scmp.ne.s32.totalorder %s49, %s50
      %p62 = scmp.eq.s32.totalorder %s19, 1
      %p63 = por %p61, %p62
      %p65 = scmp.ne.s32.totalorder %s50, %s64
      %p66 = scmp.eq.s32.totalorder %s19, 0
      %p67 = por %p65, %p66
      %s69 = sadd.s32 %s68, 1
      %p72 = scmp.eq.s32.totalorder %s13, 1
      %p73 = scmp.ne.s32.totalorder %s68, %s70
      %p74 = scmp.eq.s32.totalorder %s13, 0
      %p75 = por %p73, %p74
      %p76 = scmp.ne.s32.totalorder %s68, %s70
      %p77 = scmp.eq.s32.totalorder %s18, 1
      %p78 = por %p76, %p77
      %p79 = scmp.ne.s32.totalorder %s70, %s71
      %p80 = scmp.eq.s32.totalorder %s18, 0
      %p81 = por %p79, %p80
      %p82 = scmp.ne.s32.totalorder %s70, %s71
      %p83 = scmp.eq.s32.totalorder %s19, 1
      %p84 = por %p82, %p83
      %p86 = scmp.ne.s32.totalorder %s71, %s85
      %p87 = scmp.eq.s32.totalorder %s19, 0
      %p88 = por %p86, %p87
      %s89 = ssub.s32 %s13, %s20
      %p90 = scmp.eq.s32.totalorder %s89, 0
      %s92 = sadd.s32 %s91, 1
      %s93 = scalar_select %p90, %s91, %s92
      %p96 = pneg %p90
      %p97 = scmp.eq.s32.totalorder %s13, 1
      %p98 = por %p96, %p97
      %p99 = scmp.ne.s32.totalorder %s91, %s94
      %p100 = scmp.eq.s32.totalorder %s13, 0
      %p101 = por %p99, %p100
      %p102 = scmp.ne.s32.totalorder %s91, %s94
      %p103 = scmp.eq.s32.totalorder %s18, 1
      %p104 = por %p102, %p103
      %p105 = scmp.ne.s32.totalorder %s94, %s95
      %p106 = scmp.eq.s32.totalorder %s18, 0
      %p107 = por %p105, %p106
      %p108 = scmp.ne.s32.totalorder %s94, %s95
      %p109 = scmp.eq.s32.totalorder %s19, 1
      %p110 = por %p108, %p109
      %p112 = scmp.ne.s32.totalorder %s95, %s111
      %p113 = scmp.eq.s32.totalorder %s19, 0
      %p114 = por %p112, %p113
      %p115 = scmp.le.s32.totalorder 1, %s13
      %p116 = scmp.lt.s32.totalorder %s13, 3
      %p117 = pnand %p115, %p116
      %p118 = pneg %p117
      // Predicated region
      $region9: #{tpu_custom_call.1} parent=5 // pred_check
        _
      $region10: #{tpu_custom_call.1} parent=5 // pred_check_branch
        %120 = sbr.rel (%p117) target = $region12
      $region11: #{tpu_custom_call.1} parent=5 // pred_region
        %s121 = ssub.s32 %s13, 1
        // Predicated region
        $region13: #{tpu_custom_call.1} parent=11 // pred_check
          %p122 = pneg %p60
        $region14: #{tpu_custom_call.1} parent=11 // pred_check_branch
          %124 = sbr.rel (%p122) target = $region16
        $region15: #{tpu_custom_call.1} parent=11 // pred_region
          _
        $region16: #{tpu_custom_call.1} parent=11 // pred_fallthru
          _
        // Predicated region
        $region17: #{tpu_custom_call.1} parent=11 // pred_check
          %p125 = pneg %p81
        $region18: #{tpu_custom_call.1} parent=11 // pred_check_branch
          %127 = sbr.rel (%p125) target = $region20
        $region19: #{tpu_custom_call.1} parent=11 // pred_region
          _
        $region20: #{tpu_custom_call.1} parent=11 // pred_fallthru
          _
      $region12: #{tpu_custom_call.1} parent=5 // pred_fallthru
        _
      %p128 = scmp.lt.s32.totalorder %s13, 2
      // Predicated region
      $region21: #{tpu_custom_call.1} parent=5 // pred_check
        %p129 = pneg %p128
      $region22: #{tpu_custom_call.1} parent=5 // pred_check_branch
        %131 = sbr.rel (%p129) target = $region24
      $region23: #{tpu_custom_call.1} parent=5 // pred_region
        // Predicated region
        $region25: #{tpu_custom_call.1} parent=23 // pred_check
          %p132 = pneg %p33
        $region26: #{tpu_custom_call.1} parent=23 // pred_check_branch
          %134 = sbr.rel (%p132) target = $region28
        $region27: #{tpu_custom_call.1} parent=23 // pred_region
          %p135 = scmp.lt.s32.totalorder %s13, 1
          %s136 = scalar_select %p135, %s13, 1
          %s137 = smul.addr %s136, 16
          %s138 = smul.addr %s137, 8
          %s139 = scalar_lea.vmem %s0, %s138
        $region28: #{tpu_custom_call.1} parent=23 // pred_fallthru
          _
      $region24: #{tpu_custom_call.1} parent=5 // pred_fallthru
        _
      %p140 = scmp.le.s32.totalorder 1, %s13
      %p141 = scmp.lt.s32.totalorder %s13, 3
      %p142 = pnand %p140, %p141
      %p143 = pneg %p142
      // Predicated region
      $region29: #{tpu_custom_call.1} parent=5 // pred_check
        _
      $region30: #{tpu_custom_call.1} parent=5 // pred_check_branch
        %145 = sbr.rel (%p142) target = $region32
      $region31: #{tpu_custom_call.1} parent=5 // pred_region
        %s146 = ssub.s32 %s13, 1
        %p147 = scmp.lt.s32.totalorder %s18, 1
        %s148 = scalar_select %p147, %s18, 1
        %s149 = smul.addr %s148, 16
        %s150 = smul.addr %s149, 8
        %s151 = scalar_lea.vmem %s0, %s150
        %p152 = pneg %p39
        %p153 = pneg %p36
        %p154 = pneg %p60
        %p155 = pneg %p57
        %p156 = pneg %p81
        %p157 = pneg %p78
        %p158 = pneg %p107
        %p159 = pneg %p104
        %s160 = sand.u32 %s94, 1
        %s161 = scalar_lea.sflag [#allocation4], %s160
        %s162 = sand.u32 %s94, 1
        %s163 = scalar_lea.vmem [#allocation3], %s162
        %p164 = scmp.lt.s32.totalorder %s18, 1
        %s165 = scalar_select %p164, %s18, 1
        %s166 = smul.addr %s165, 16
        %s167 = smul.addr %s166, 8
        %s168 = scalar_lea.vmem %s0, %s167
        %v169 = vld [vmem:[%s168] sm:$0xff]
        %v170 = vld [vmem:[%s168 + $0x8] sm:$0xff]
        %v171 = vld [vmem:[%s168 + $0x10] sm:$0xff]
        %v172 = vld [vmem:[%s168 + $0x18] sm:$0xff]
        %v173 = vld [vmem:[%s168 + $0x20] sm:$0xff]
        %v174 = vld [vmem:[%s168 + $0x28] sm:$0xff]
        %v175 = vld [vmem:[%s168 + $0x30] sm:$0xff]
        %v176 = vld [vmem:[%s168 + $0x38] sm:$0xff]
        %v177 = vld [vmem:[%s168 + $0x40] sm:$0xff]
        %v178 = vld [vmem:[%s168 + $0x48] sm:$0xff]
        %v179 = vld [vmem:[%s168 + $0x50] sm:$0xff]
        %v180 = vld [vmem:[%s168 + $0x58] sm:$0xff]
        %v181 = vld [vmem:[%s168 + $0x60] sm:$0xff]
        %v182 = vld [vmem:[%s168 + $0x68] sm:$0xff]
        %v183 = vld [vmem:[%s168 + $0x70] sm:$0xff]
        %v184 = vld [vmem:[%s168 + $0x78] sm:$0xff]
        %v185 = vld [vmem:[%s1] sm:$0x1]
        %v186 = vperm.slane %v185, 0
        %v187 = vlaneseq
        %v188 = vshrl.u32 %v187, 7
        %190 = vset.pattern.permute.xlu0 %v188
        %191 = vperm.xlu0 %190, %v186
        %v192 = vpop.permute.xlu0 %191
        %v193 = vlaneseq
        %v194 = vshrl.u32 %v193, 7
        %v195 = vadd.s32 %v194, 8
        %196 = vset.pattern.permute.xlu0 %v195
        %197 = vperm.xlu0 %196, %v186
        %v198 = vpop.permute.xlu0 %197
        %v199 = vlaneseq
        %v200 = vshrl.u32 %v199, 7
        %v201 = vadd.s32 %v200, 16
        %202 = vset.pattern.permute.xlu0 %v201
        %203 = vperm.xlu0 %202, %v186
        %v204 = vpop.permute.xlu0 %203
        %v205 = vlaneseq
        %v206 = vshrl.u32 %v205, 7
        %v207 = vadd.s32 %v206, 24
        %208 = vset.pattern.permute.xlu0 %v207
        %209 = vperm.xlu0 %208, %v186
        %v210 = vpop.permute.xlu0 %209
        %v211 = vlaneseq
        %v212 = vshrl.u32 %v211, 7
        %v213 = vadd.s32 %v212, 32
        %214 = vset.pattern.permute.xlu0 %v213
        %215 = vperm.xlu0 %214, %v186
        %v216 = vpop.permute.xlu0 %215
        %v217 = vlaneseq
        %v218 = vshrl.u32 %v217, 7
        %v219 = vadd.s32 %v218, 40
        %220 = vset.pattern.permute.xlu0 %v219
        %221 = vperm.xlu0 %220, %v186
        %v222 = vpop.permute.xlu0 %221
        %v223 = vlaneseq
        %v224 = vshrl.u32 %v223, 7
        %v225 = vadd.s32 %v224, 48
        %226 = vset.pattern.permute.xlu0 %v225
        %227 = vperm.xlu0 %226, %v186
        %v228 = vpop.permute.xlu0 %227
        %v229 = vlaneseq
        %v230 = vshrl.u32 %v229, 7
        %v231 = vadd.s32 %v230, 56
        %232 = vset.pattern.permute.xlu0 %v231
        %233 = vperm.xlu0 %232, %v186
        %v234 = vpop.permute.xlu0 %233
        %v235 = vlaneseq
        %v236 = vshrl.u32 %v235, 7
        %v237 = vadd.s32 %v236, 64
        %238 = vset.pattern.permute.xlu0 %v237
        %239 = vperm.xlu0 %238, %v186
        %v240 = vpop.permute.xlu0 %239
        %v241 = vlaneseq
        %v242 = vshrl.u32 %v241, 7
        %v243 = vadd.s32 %v242, 72
        %244 = vset.pattern.permute.xlu0 %v243
        %245 = vperm.xlu0 %244, %v186
        %v246 = vpop.permute.xlu0 %245
        %v247 = vlaneseq
        %v248 = vshrl.u32 %v247, 7
        %v249 = vadd.s32 %v248, 80
        %250 = vset.pattern.permute.xlu0 %v249
        %251 = vperm.xlu0 %250, %v186
        %v252 = vpop.permute.xlu0 %251
        %v253 = vlaneseq
        %v254 = vshrl.u32 %v253, 7
        %v255 = vadd.s32 %v254, 88
        %256 = vset.pattern.permute.xlu0 %v255
        %257 = vperm.xlu0 %256, %v186
        %v258 = vpop.permute.xlu0 %257
        %v259 = vlaneseq
        %v260 = vshrl.u32 %v259, 7
        %v261 = vadd.s32 %v260, 96
        %262 = vset.pattern.permute.xlu0 %v261
        %263 = vperm.xlu0 %262, %v186
        %v264 = vpop.permute.xlu0 %263
        %v265 = vlaneseq
        %v266 = vshrl.u32 %v265, 7
        %v267 = vadd.s32 %v266, 104
        %268 = vset.pattern.permute.xlu0 %v267
        %269 = vperm.xlu0 %268, %v186
        %v270 = vpop.permute.xlu0 %269
        %v271 = vlaneseq
        %v272 = vshrl.u32 %v271, 7
        %v273 = vadd.s32 %v272, 112
        %274 = vset.pattern.permute.xlu0 %v273
        %275 = vperm.xlu0 %274, %v186
        %v276 = vpop.permute.xlu0 %275
        %v277 = vlaneseq
        %v278 = vshrl.u32 %v277, 7
        %v279 = vadd.s32 %v278, 120
        %280 = vset.pattern.permute.xlu0 %v279
        %281 = vperm.xlu0 %280, %v186
        %v282 = vpop.permute.xlu0 %281
        %v283 = vmul.f32 %v169, %v192
        %v284 = vmul.f32 %v170, %v198
        %v285 = vmul.f32 %v171, %v204
        %v286 = vmul.f32 %v172, %v210
        %v287 = vmul.f32 %v173, %v216
        %v288 = vmul.f32 %v174, %v222
        %v289 = vmul.f32 %v175, %v228
        %v290 = vmul.f32 %v176, %v234
        %v291 = vmul.f32 %v177, %v240
        %v292 = vmul.f32 %v178, %v246
        %v293 = vmul.f32 %v179, %v252
        %v294 = vmul.f32 %v180, %v258
        %v295 = vmul.f32 %v181, %v264
        %v296 = vmul.f32 %v182, %v270
        %v297 = vmul.f32 %v183, %v276
        %v298 = vmul.f32 %v184, %v282
        %vm299 = vcmask 64512
        %v300 = vsel %vm299, %v283, 0.0
        %v301 = vsel %vm299, %v284, 0.0
        %v302 = vadd.f32 %v300, %v301
        %v303 = vsel %vm299, %v285, 0.0
        %v304 = vadd.f32 %v302, %v303
        %v305 = vsel %vm299, %v286, 0.0
        %v306 = vadd.f32 %v304, %v305
        %v307 = vsel %vm299, %v287, 0.0
        %v308 = vadd.f32 %v306, %v307
        %v309 = vsel %vm299, %v288, 0.0
        %v310 = vadd.f32 %v308, %v309
        %v311 = vsel %vm299, %v289, 0.0
        %v312 = vadd.f32 %v310, %v311
        %v313 = vsel %vm299, %v290, 0.0
        %v314 = vadd.f32 %v312, %v313
        %v315 = vsel %vm299, %v291, 0.0
        %v316 = vadd.f32 %v314, %v315
        %v317 = vsel %vm299, %v292, 0.0
        %v318 = vadd.f32 %v316, %v317
        %v319 = vsel %vm299, %v293, 0.0
        %v320 = vadd.f32 %v318, %v319
        %v321 = vsel %vm299, %v294, 0.0
        %v322 = vadd.f32 %v320, %v321
        %v323 = vsel %vm299, %v295, 0.0
        %v324 = vadd.f32 %v322, %v323
        %v325 = vsel %vm299, %v296, 0.0
        %v326 = vadd.f32 %v324, %v325
        %v327 = vsel %vm299, %v297, 0.0
        %v328 = vadd.f32 %v326, %v327
        %v329 = vsel %vm299, %v298, 0.0
        %v330 = vadd.f32 %v328, %v329
        %v331 = vrot.slane %v330, 4
        %v332 = vadd.f32 %v330, %v331
        %v333 = vrot.slane %v332, 2
        %v334 = vadd.f32 %v332, %v333
        %v335 = vrot.slane %v334, 1
        %v336 = vadd.f32 %v334, %v335
        %s337 = sld [smem:[#allocation2]]
        %v338 = vstv %s337
        %v339 = vadd.f32 %v336, %v338
        %v340 = vmax.f32 %v339, 0.0
        %vm341 = vcmask 57344
        %342 = vst.msk [vmem:[%s163] sm:$0x1] %vm341, %v340
        %s343 = sand.u32 %s94, 1
        %s344 = scalar_lea.sflag [#allocation4], %s343
        %s345 = sand.u32 %s94, 1
        %s346 = scalar_lea.vmem [#allocation3], %s345
        // Predicated region
        $region33: #{tpu_custom_call.1} parent=31 // pred_check
          %p347 = pneg %p104
        $region34: #{tpu_custom_call.1} parent=31 // pred_check_branch
          %349 = sbr.rel (%p347) target = $region36
        $region35: #{tpu_custom_call.1} parent=31 // pred_region
          %351 = vsyncadd %s344, 0
          %s352 = scalar_lea.hbm %s3, %s18
          %s354 = sshll.u32 %s346, 4
          %s355 = int_to_ptr.vmem [resolvable:$true] %s354
          %s356 = sshll.u32 %s352, 4
          %s357 = int_to_ptr.hbm [resolvable:$true] %s356
          %359 = dma.vmem_to_hbm [thread:$0]  %s355, 16, %s357, %s344
        $region36: #{tpu_custom_call.1} parent=31 // pred_fallthru
          _
      $region32: #{tpu_custom_call.1} parent=5 // pred_fallthru
        _
      %p360 = scmp.le.s32.totalorder 2, %s13
      // Predicated region
      $region37: #{tpu_custom_call.1} parent=5 // pred_check
        %p361 = pneg %p360
      $region38: #{tpu_custom_call.1} parent=5 // pred_check_branch
        %363 = sbr.rel (%p361) target = $region40
      $region39: #{tpu_custom_call.1} parent=5 // pred_region
        %s364 = ssub.s32 %s13, 2
        // Predicated region
        $region41: #{tpu_custom_call.1} parent=39 // pred_check
          %p365 = pneg %p110
        $region42: #{tpu_custom_call.1} parent=39 // pred_check_branch
          %367 = sbr.rel (%p365) target = $region44
        $region43: #{tpu_custom_call.1} parent=39 // pred_region
          %s368 = sand.u32 %s95, 1
          %s369 = scalar_lea.sflag [#allocation4], %s368
          %s370 = sand.u32 %s95, 1
          %s371 = scalar_lea.vmem [#allocation3], %s370
          %373 = dma.done %s369, 16
        $region44: #{tpu_custom_call.1} parent=39 // pred_fallthru
          _
      $region40: #{tpu_custom_call.1} parent=5 // pred_fallthru
        _
    $region6: #{tpu_custom_call.1} parent=1 // loop_footer
      %s17 = sadd.s32 1, %s13
    $region7: #{tpu_custom_call.1} parent=1 // loop_footer_branch
      %12 = sbr.rel target = $region3
    $region8: #{tpu_custom_call.1} parent=1 // loop_exit
      _
    %374 = vsyncpa [#allocation4], 1
    %s375 = scalar_lea.sflag [#allocation4], 1
    %376 = vsyncpa %s375, 1

</llo_original>
